<compile_context>
chip_gen: v6e
topology: v6e:2x2x1
jax: 0.10.0
libtpu: 0.0.40
codegen_flags: <defaults>
</compile_context>

<pallas_src>
import math
import functools

import jax
import jax.numpy as jnp
from jax import lax
from jax.experimental import pallas as pl
from jax.experimental.pallas import tpu as pltpu


_NEG_BIG = -1e30  # finite "minus infinity": exp() underflows to exactly 0 in f32


# ---------------- fused, row-tiled QKV projection ----------------

def _qkv_proj_kernel(x_ref, w_ref, b_ref, q_ref, k_ref, v_ref, *, embed_dim):
    # x: (TM, E), w: (3E, E) (PyTorch nn.Linear layout), b: (1, 3E)
    y = lax.dot_general(x_ref[...], w_ref[...], (((1,), (1,)), ((), ())),
                        preferred_element_type=jnp.float32)
    y = y + b_ref[...]
    E = embed_dim
    q_ref[...] = y[:, :E].astype(q_ref.dtype)
    k_ref[...] = y[:, E:2 * E].astype(k_ref.dtype)
    v_ref[...] = y[:, 2 * E:].astype(v_ref.dtype)


def fused_qkv_projection(x, w_qkv, b_qkv, *, tile_rows=256):
    """y = x @ W_qkv^T + b_qkv, split into q/k/v outputs of shape (N, E) each."""
    N, E = x.shape
    D3 = w_qkv.shape[0]

    # pick a row tile that divides N (software pipelining over row tiles);
    # the (3E, E) weight block index is constant across the grid, so the weight
    # is DMA'd into VMEM once and stays resident.
    tm = tile_rows
    while tm > 8 and N % tm != 0:
        tm //= 2
    if N % tm != 0:
        tm = N

    kernel = functools.partial(_qkv_proj_kernel, embed_dim=E)
    out_sds = jax.ShapeDtypeStruct((N, E), x.dtype)
    q, k, v = pl.pallas_call(
        kernel,
        out_shape=(out_sds, out_sds, out_sds),
        grid=(N // tm,),
        in_specs=[
            pl.BlockSpec((tm, E), lambda i: (i, 0)),
            pl.BlockSpec((D3, E), lambda i: (0, 0)),
            pl.BlockSpec((1, D3), lambda i: (0, 0)),
        ],
        out_specs=(
            pl.BlockSpec((tm, E), lambda i: (i, 0)),
            pl.BlockSpec((tm, E), lambda i: (i, 0)),
            pl.BlockSpec((tm, E), lambda i: (i, 0)),
        ),
        compiler_params=pltpu.CompilerParams(dimension_semantics=("parallel",)),
    )(x, w_qkv, b_qkv.reshape(1, D3))
    return q, k, v


# ---------------- chunked sliding-window attention ----------------

def _sliding_window_attn_kernel(q_ref, kp_ref, kc_ref, kn_ref,
                                vp_ref, vc_ref, vn_ref,
                                fm_ref, qm_ref, o_ref, *,
                                seq_len, chunk, window, num_heads):
    C = chunk
    c = pl.program_id(1)

    q = q_ref[0]                                                        # (C, H, D)
    k_all = jnp.concatenate([kp_ref[0], kc_ref[0], kn_ref[0]], axis=0)  # (3C, H, D)
    v_all = jnp.concatenate([vp_ref[0], vc_ref[0], vn_ref[0]], axis=0)  # (3C, H, D)
    fm = fm_ref[0, 0]                                                   # (1, 3C) additive key mask
    qm = qm_ref[0]                                                      # (C, 1) masked-query rows

    # band + key-validity additive bias, built once per (C, 3C) tile and shared
    # across heads.  query position = c*C + i, key position = (c-1)*C + j
    #   =>  qpos - kpos = C + i - j
    i = lax.broadcasted_iota(jnp.int32, (C, 3 * C), 0)
    j = lax.broadcasted_iota(jnp.int32, (C, 3 * C), 1)
    in_band = jnp.abs((C + i) - j) <= window
    kpos = (c - 1) * C + j
    keep = jnp.logical_and(in_band, jnp.logical_and(kpos >= 0, kpos < seq_len))
    bias = jnp.where(keep, fm, _NEG_BIG)                               # (C, 3C)

    head_outs = []
    for h in range(num_heads):                         # static unroll over heads
        q_h = q[:, h, :]                               # (C, D), scale folded into W_q
        k_h = k_all[:, h, :]                           # (3C, D)
        v_h = v_all[:, h, :]                           # (3C, D)
        s = lax.dot_general(q_h, k_h, (((1,), (1,)), ((), ())),
                            preferred_element_type=jnp.float32)        # (C, 3C)
        s = s + bias
        m = jnp.max(s, axis=-1, keepdims=True)
        e = jnp.exp(s - m)
        denom = jnp.sum(e, axis=-1, keepdims=True)
        o_h = lax.dot_general(e.astype(v_h.dtype), v_h, (((1,), (0,)), ((), ())),
                              preferred_element_type=jnp.float32)       # (C, D)
        # normalize the small (C, D) output instead of the (C, 3C) probabilities
        head_outs.append(o_h * pl.reciprocal(denom, approx=True))

    ctx = jnp.concatenate(head_outs, axis=-1)          # (C, H*D) -> single lane-dense store
    ctx = ctx * (1.0 - qm)                             # zero outputs of masked query rows
    o_ref[0] = ctx.astype(o_ref.dtype)


def sliding_window_attention(q, k, v, fm_windows, qmask, *, window, chunk, out_dtype):
    B, S, H, D = q.shape
    E = H * D
    C = chunk
    nchunks = S // C

    def q_spec():
        return pl.BlockSpec((1, C, H, D), lambda b, c: (b, c, 0, 0))

    def kv_spec(delta):
        def imap(b, c):
            # clamp at sequence edges; out-of-range key positions are masked in-kernel
            return (b, jnp.clip(c + delta, 0, nchunks - 1), 0, 0)
        return pl.BlockSpec((1, C, H, D), imap)

    kernel = functools.partial(_sliding_window_attn_kernel,
                               seq_len=S, chunk=C, window=window, num_heads=H)

    return pl.pallas_call(
        kernel,
        out_shape=jax.ShapeDtypeStruct((B, S, E), out_dtype),
        grid=(B, nchunks),
        in_specs=[
            q_spec(),                                   # q  (current chunk)
            kv_spec(-1), kv_spec(0), kv_spec(+1),       # k  prev / cur / next
            kv_spec(-1), kv_spec(0), kv_spec(+1),       # v  prev / cur / next
            pl.BlockSpec((1, 1, 1, 3 * C), lambda b, c: (b, c, 0, 0)),   # key float mask window
            pl.BlockSpec((1, C, 1), lambda b, c: (b, c, 0)),             # query-row mask
        ],
        out_specs=pl.BlockSpec((1, C, E), lambda b, c: (b, c, 0)),
        compiler_params=pltpu.CompilerParams(
            dimension_semantics=("parallel", "parallel")),
    )(q, k, k, k, v, v, v, fm_windows, qmask)


# ---------------- forward (glue in plain JAX) ----------------

def longformer_self_attention_forward(hidden_states, attention_mask, params,
                                      *, num_heads, attention_window):
    B, S, E = hidden_states.shape
    H = num_heads
    D = E // H
    assert attention_window % 2 == 0
    w = attention_window // 2
    assert S % (2 * w) == 0, "seq_len must be a multiple of attention_window"

    # query-chunk size: Longformer's 2w, grown toward 256 rows (feeds the 256-wide MXU
    # on v6e/v7x) as long as it still divides S.  Keep tiles modest for v7x's 64 MiB VMEM.
    C = 2 * w
    while C < 256 and S % (2 * C) == 0:
        C *= 2
    C = min(C, S)
    assert C % 8 == 0 or C == S
    nchunks = S // C

    mask = attention_mask.reshape(B, S)   # == squeeze(dim=2).squeeze(dim=1)
    # TODO(synk): the global-attention branch (mask > 0) relies on data-dependent
    # nonzero()/scatter indexing with runtime-shaped gathers; only the local
    # sliding-window path is implemented here (inputs contain no positive mask values).

    # fused QKV projection, 1/sqrt(head_dim) folded into the query weights/bias
    scale = 1.0 / math.sqrt(D)
    w_qkv = jnp.concatenate([params["q_w"] * scale, params["k_w"], params["v_w"]],
                            axis=0)                       # (3E, E)
    b_qkv = jnp.concatenate([params["q_b"] * scale, params["k_b"], params["v_b"]],
                            axis=0)                       # (3E,)
    x = hidden_states.reshape(B * S, E)
    q, k, v = fused_qkv_projection(x, w_qkv, b_qkv)       # each (B*S, E)
    q = q.reshape(B, S, H, D)                             # free reshapes, no HBM transpose
    k = k.reshape(B, S, H, D)
    v = v.reshape(B, S, H, D)

    # additive -10000 key mask, pre-windowed per query chunk: (B, nchunks, 1, 3C).
    # built with one vectorized gather (no per-chunk Python loop).
    fmask = jnp.where(mask != 0, -10000.0, 0.0).astype(jnp.float32)
    padded = jnp.pad(fmask, ((0, 0), (C, C)))                               # (B, S+2C)
    pos = jnp.arange(nchunks)[:, None] * C + jnp.arange(3 * C)[None, :]     # (nchunks, 3C)
    fm_windows = jnp.take(padded, pos, axis=1).reshape(B, nchunks, 1, 3 * C)

    qmask = (mask < 0).astype(jnp.float32).reshape(B, S, 1)

    return sliding_window_attention(q, k, v, fm_windows, qmask,
                                    window=w, chunk=C,
                                    out_dtype=hidden_states.dtype)


# ---------------- pure-JAX reference (for validation) ----------------

def reference_forward(hidden_states, attention_mask, params, *, num_heads, attention_window):
    B, S, E = hidden_states.shape
    H = num_heads
    D = E // H
    w = attention_window // 2
    mask = attention_mask.reshape(B, S)

    def lin(x, wm, b):
        return x @ wm.T + b

    q = lin(hidden_states, params["q_w"], params["q_b"]) / math.sqrt(D)
    k = lin(hidden_states, params["k_w"], params["k_b"])
    v = lin(hidden_states, params["v_w"], params["v_b"])
    qh = q.reshape(B, S, H, D).transpose(0, 2, 1, 3)
    kh = k.reshape(B, S, H, D).transpose(0, 2, 1, 3)
    vh = v.reshape(B, S, H, D).transpose(0, 2, 1, 3)
    s = jnp.einsum("bhid,bhjd->bhij", qh, kh)
    s = s + jnp.where(mask != 0, -10000.0, 0.0)[:, None, None, :]
    i = jnp.arange(S)[:, None]
    j = jnp.arange(S)[None, :]
    s = jnp.where(jnp.abs(i - j) <= w, s, -jnp.inf)
    p = jax.nn.softmax(s, axis=-1)
    p = jnp.where((mask < 0)[:, None, :, None], 0.0, p)
    o = jnp.einsum("bhij,bhjd->bhid", p, vh)
    return o.transpose(0, 2, 1, 3).reshape(B, S, E)


if __name__ == "__main__":
    B, S, E, H = 2, 16, 32, 4
    attention_window = 8                       # one-sided window w = 4

    key = jax.random.PRNGKey(0)
    ks = jax.random.split(key, 14)

    def init_lin(kw, kb):
        return (jax.random.normal(kw, (E, E), jnp.float32) * 0.02,
                jax.random.normal(kb, (E,), jnp.float32) * 0.02)

    params = {}
    # query/key/value + *_global linears (globals initialized for shape parity; unused in
    # the local-attention-only path).
    for idx, name in enumerate(["q", "k", "v", "qg", "kg", "vg"]):
        wgt, b = init_lin(ks[2 * idx], ks[2 * idx + 1])
        params[name + "_w"] = wgt
        params[name + "_b"] = b

    hidden_states = jax.random.normal(ks[12], (B, S, E), jnp.float32)
    attention_mask = jnp.zeros((B, 1, 1, S), jnp.float32)
    attention_mask = attention_mask.at[0, 0, 0, -2:].set(-1.0)   # masked tokens, no global

    out = longformer_self_attention_forward(
        hidden_states, attention_mask, params,
        num_heads=H, attention_window=attention_window)
    out = jax.block_until_ready(out)

    ref = reference_forward(
        hidden_states, attention_mask, params,
        num_heads=H, attention_window=attention_window)

    assert out.shape == (B, S, E)
    max_err = float(jnp.max(jnp.abs(out - ref)))
    # tolerance allows for the EUP approximate reciprocal used to normalize softmax
    assert jnp.allclose(out, ref, atol=2e-3, rtol=2e-3), f"max_err={max_err}"
    print("KERNEL_OK")
</pallas_src>

<mosaic_0001>
module attributes {stable_mosaic.version = 11 : i64} {
  func.func @_qkv_proj_kernel(%arg0: i32, %arg1: memref<32x32xf32, #tpu.memory_space<vmem>>, %arg2: memref<96x32xf32, #tpu.memory_space<vmem>>, %arg3: memref<1x96xf32, #tpu.memory_space<vmem>>, %arg4: memref<32x32xf32, #tpu.memory_space<vmem>>, %arg5: memref<32x32xf32, #tpu.memory_space<vmem>>, %arg6: memref<32x32xf32, #tpu.memory_space<vmem>>) attributes {dimension_semantics = [#tpu.dimension_semantics<parallel>], iteration_bounds = array<i64: 1>, scalar_prefetch = 0 : i64, scratch_operands = 0 : i64, tpu.core_type = #tpu.core_type<tc>, window_params = [{transform_indices = @transform_0, window_bounds = array<i64: 32, 32>}, {pipeline_mode = #tpu.pipeline_mode<synchronous>, transform_indices = @transform_1, window_bounds = array<i64: 96, 32>}, {pipeline_mode = #tpu.pipeline_mode<synchronous>, transform_indices = @transform_2, window_bounds = array<i64: 1, 96>}, {transform_indices = @transform_3, window_bounds = array<i64: 32, 32>}, {transform_indices = @transform_4, window_bounds = array<i64: 32, 32>}, {transform_indices = @transform_5, window_bounds = array<i64: 32, 32>}]} {
    %c0 = arith.constant 0 : index
    %c0_0 = arith.constant 0 : index
    %0 = vector.load %arg1[%c0, %c0_0] : memref<32x32xf32, #tpu.memory_space<vmem>>, vector<32x32xf32>
    %c0_1 = arith.constant 0 : index
    %c0_2 = arith.constant 0 : index
    %1 = vector.load %arg2[%c0_1, %c0_2] : memref<96x32xf32, #tpu.memory_space<vmem>>, vector<96x32xf32>
    %cst = arith.constant dense<0.000000e+00> : vector<32x96xf32>
    %2 = tpu.matmul %0, %1, %cst {dimension_numbers = #tpu.dot_dimension_numbers<[1], [1], [0], [0], [0, 0, 1, 0], [], []>} : vector<32x32xf32>, vector<96x32xf32>, vector<32x96xf32> -> vector<32x96xf32>
    %c0_3 = arith.constant 0 : index
    %c0_4 = arith.constant 0 : index
    %3 = vector.load %arg3[%c0_3, %c0_4] : memref<1x96xf32, #tpu.memory_space<vmem>>, vector<1x96xf32>
    %4 = vector.broadcast %3 : vector<1x96xf32> to vector<32x96xf32>
    %5 = arith.addf %2, %4 : vector<32x96xf32>
    %6 = vector.extract_strided_slice %5 {offsets = [0, 0], sizes = [32, 32], strides = [1, 1]} : vector<32x96xf32> to vector<32x32xf32>
    %c0_5 = arith.constant 0 : index
    %c0_6 = arith.constant 0 : index
    %7 = vector.load %arg4[%c0_5, %c0_6] : memref<32x32xf32, #tpu.memory_space<vmem>>, vector<32x32xf32>
    tpu.vector_store %arg4[%c0_5, %c0_6], %6 {strides = array<i32>} : memref<32x32xf32, #tpu.memory_space<vmem>>, vector<32x32xf32>,
    %8 = vector.extract_strided_slice %5 {offsets = [0, 32], sizes = [32, 32], strides = [1, 1]} : vector<32x96xf32> to vector<32x32xf32>
    %c0_7 = arith.constant 0 : index
    %c0_8 = arith.constant 0 : index
    %9 = vector.load %arg5[%c0_7, %c0_8] : memref<32x32xf32, #tpu.memory_space<vmem>>, vector<32x32xf32>
    tpu.vector_store %arg5[%c0_7, %c0_8], %8 {strides = array<i32>} : memref<32x32xf32, #tpu.memory_space<vmem>>, vector<32x32xf32>,
    %10 = vector.extract_strided_slice %5 {offsets = [0, 64], sizes = [32, 32], strides = [1, 1]} : vector<32x96xf32> to vector<32x32xf32>
    %c0_9 = arith.constant 0 : index
    %c0_10 = arith.constant 0 : index
    %11 = vector.load %arg6[%c0_9, %c0_10] : memref<32x32xf32, #tpu.memory_space<vmem>>, vector<32x32xf32>
    tpu.vector_store %arg6[%c0_9, %c0_10], %10 {strides = array<i32>} : memref<32x32xf32, #tpu.memory_space<vmem>>, vector<32x32xf32>,
    return
  }
  func.func @transform_0(%arg0: i32) -> (i32, i32) {
    %c0_i32 = arith.constant 0 : i32
    %c0_i32_0 = arith.constant 0 : i32
    return %arg0, %c0_i32 : i32, i32
  }
  func.func @transform_1(%arg0: i32) -> (i32, i32) {
    %c0_i32 = arith.constant 0 : i32
    %c0_i32_0 = arith.constant 0 : i32
    %c0_i32_1 = arith.constant 0 : i32
    return %c0_i32, %c0_i32_0 : i32, i32
  }
  func.func @transform_2(%arg0: i32) -> (i32, i32) {
    %c0_i32 = arith.constant 0 : i32
    %c0_i32_0 = arith.constant 0 : i32
    %c0_i32_1 = arith.constant 0 : i32
    return %c0_i32, %c0_i32_0 : i32, i32
  }
  func.func @transform_3(%arg0: i32) -> (i32, i32) {
    %c0_i32 = arith.constant 0 : i32
    %c0_i32_0 = arith.constant 0 : i32
    return %arg0, %c0_i32 : i32, i32
  }
  func.func @transform_4(%arg0: i32) -> (i32, i32) {
    %c0_i32 = arith.constant 0 : i32
    %c0_i32_0 = arith.constant 0 : i32
    return %arg0, %c0_i32 : i32, i32
  }
  func.func @transform_5(%arg0: i32) -> (i32, i32) {
    %c0_i32 = arith.constant 0 : i32
    %c0_i32_0 = arith.constant 0 : i32
    return %arg0, %c0_i32 : i32, i32
  }
}

</mosaic_0001>

<llo_original>
// kernel: tpu_custom_call.1
$region0: #{tpu_custom_call.1}
  #allocation0 [shape = 'u32[]', space=smem, size = 0x4, offset = 0x4, fixed_abs, tag = 'smem constant byte address 0x4 - core index']
  #allocation1 [shape = 'u32[144,128]{1,0:T(1,128)}', space=vmem, size = 0x12000, scoped, tag = 'internal scratch']
  %s0 = inlined_call_operand.vmem [shape: f32[32,32], index: 0, kind: input, shape index: {}]
  %s1 = inlined_call_operand.vmem [shape: f32[96,32], index: 1, kind: input, shape index: {}]
  %s2 = inlined_call_operand.vmem [shape: f32[1,96], index: 2, kind: input, shape index: {}]
  %s3 = inlined_call_operand.hbm [shape: f32[32,32], index: 3, kind: output, shape index: {0}]
  %s4 = inlined_call_operand.hbm [shape: f32[32,32], index: 4, kind: output, shape index: {1}]
  %s5 = inlined_call_operand.hbm [shape: f32[32,32], index: 5, kind: output, shape index: {2}]
  %6 = xla_tuple %s3, %s4, %s5
  %s7 = sld [smem:[#allocation0]]
  $region38: #{tpu_custom_call.1} parent=0
    _
  %s9 = ssub.s32 1, %s7
  %s10 = scalar_select 0, %s9, %s7
  $region1: #{tpu_custom_call.1} parent=0
    #allocation2 [shape = 'u8[16384]{0}', space=vmem, size = 0x4000, scoped, tag = 'output window, operand 0, single buffered']
    #allocation3 [shape = 's32[1]{0}', space=sflag, size = 0x4, scoped, tag = 'scoped memory for tpu_custom_call.1']
    #allocation4 [shape = 'u8[16384]{0}', space=vmem, size = 0x4000, scoped, tag = 'output window, operand 1, single buffered']
    #allocation5 [shape = 's32[1]{0}', space=sflag, size = 0x4, scoped, tag = 'scoped memory for tpu_custom_call.1']
    #allocation6 [shape = 'u8[16384]{0}', space=vmem, size = 0x4000, scoped, tag = 'output window, operand 2, single buffered']
    %11 = vsyncpa [#allocation3], 0
    %12 = vsyncpa [#allocation5], 0
    // Predicated region
    $region2: #{tpu_custom_call.1} parent=1 // pred_check
      _
    $region3: #{tpu_custom_call.1} parent=1 // pred_check_branch
      %14 = sbr.rel (0) target = $region5
    $region4: #{tpu_custom_call.1} parent=1 // pred_region
      _
    $region5: #{tpu_custom_call.1} parent=1 // pred_fallthru
      _
    // Predicated region
    $region6: #{tpu_custom_call.1} parent=1 // pred_check
      _
    $region7: #{tpu_custom_call.1} parent=1 // pred_check_branch
      %16 = sbr.rel (0) target = $region9
    $region8: #{tpu_custom_call.1} parent=1 // pred_region
      _
    $region9: #{tpu_custom_call.1} parent=1 // pred_fallthru
      _
    // Predicated region
    $region10: #{tpu_custom_call.1} parent=1 // pred_check
      _
    $region11: #{tpu_custom_call.1} parent=1 // pred_check_branch
      %18 = sbr.rel (0) target = $region13
    $region12: #{tpu_custom_call.1} parent=1 // pred_region
      _
    $region13: #{tpu_custom_call.1} parent=1 // pred_fallthru
      _
    %v19 = vld [vmem:[%s0] sm:$0xff]
    %v20 = vld [vmem:[%s0 + $0x8] sm:$0xff]
    %v21 = vld [vmem:[%s0 + $0x10] sm:$0xff]
    %v22 = vld [vmem:[%s0 + $0x18] sm:$0xff]
    %v23 = vld [vmem:[%s1] sm:$0xff]
    %v24 = vld [vmem:[%s1 + $0x8] sm:$0xff]
    %v25 = vld [vmem:[%s1 + $0x10] sm:$0xff]
    %v26 = vld [vmem:[%s1 + $0x18] sm:$0xff]
    %v27 = vld [vmem:[%s1 + $0x20] sm:$0xff]
    %v28 = vld [vmem:[%s1 + $0x28] sm:$0xff]
    %v29 = vld [vmem:[%s1 + $0x30] sm:$0xff]
    %v30 = vld [vmem:[%s1 + $0x38] sm:$0xff]
    %v31 = vld [vmem:[%s1 + $0x40] sm:$0xff]
    %v32 = vld [vmem:[%s1 + $0x48] sm:$0xff]
    %v33 = vld [vmem:[%s1 + $0x50] sm:$0xff]
    %v34 = vld [vmem:[%s1 + $0x58] sm:$0xff]
    %v35 = vld [vmem:[%s2] sm:$0x1]
    %v37 = vlaneseq
    %v38 = vshrl.u32 %v37, 7
    %v39 = vsub.s32 0, %v38
    %v40 = vrot.slane %v35, %v39
    %vm42 = vcmask 261120
    %v44 = vsel %vm42, %v19, 0
    %v47 = vsel %vm42, %v20, 0
    %v50 = vsel %vm42, %v21, 0
    %v53 = vsel %vm42, %v22, 0
    %v56 = vsel %vm42, %v23, 0
    %v59 = vsel %vm42, %v24, 0
    %v62 = vsel %vm42, %v25, 0
    %v65 = vsel %vm42, %v26, 0
    %v68 = vsel %vm42, %v27, 0
    %v71 = vsel %vm42, %v28, 0
    %v74 = vsel %vm42, %v29, 0
    %v77 = vsel %vm42, %v30, 0
    %v80 = vsel %vm42, %v31, 0
    %v83 = vsel %vm42, %v32, 0
    %v86 = vsel %vm42, %v33, 0
    %v89 = vsel %vm42, %v34, 0
    %91 = vmatprep.subr.mxu0 0.0
    %92 = vmatpush1.xpose.msra.mxu0 0.0
    %93 = vmatprep.subr.mxu0 0.0
    %94 = vmatpush1.xpose.msra.mxu0 0.0
    %95 = vmatprep.subr.mxu0 0.0
    %96 = vmatpush1.xpose.msra.mxu0 0.0
    %97 = vmatprep.subr.mxu0 0.0
    %98 = vmatpush1.xpose.msra.mxu0 0.0
    %99 = vmatprep.subr.mxu0 0.0
    %100 = vmatpush1.xpose.msra.mxu0 %v89
    %101 = vmatprep.subr.mxu0 0.0
    %102 = vmatpush1.xpose.msra.mxu0 %v86
    %103 = vmatprep.subr.mxu0 0.0
    %104 = vmatpush1.xpose.msra.mxu0 %v83
    %105 = vmatprep.subr.mxu0 0.0
    %106 = vmatpush1.xpose.msra.mxu0 %v80
    %107 = vmatprep.subr.mxu0 0.0
    %108 = vmatpush1.xpose.msra.mxu0 %v77
    %109 = vmatprep.subr.mxu0 0.0
    %110 = vmatpush1.xpose.msra.mxu0 %v74
    %111 = vmatprep.subr.mxu0 0.0
    %112 = vmatpush1.xpose.msra.mxu0 %v71
    %113 = vmatprep.subr.mxu0 0.0
    %114 = vmatpush1.xpose.msra.mxu0 %v68
    %115 = vmatprep.subr.mxu0 0.0
    %116 = vmatpush1.xpose.msra.mxu0 %v65
    %117 = vmatprep.subr.mxu0 0.0
    %118 = vmatpush1.xpose.msra.mxu0 %v62
    %119 = vmatprep.subr.mxu0 0.0
    %120 = vmatpush1.xpose.msra.mxu0 %v59
    %121 = vmatprep.subr.mxu0 0.0
    %122 = vmatpush1.xpose.msra.mxu0 %v56
    %123 = vmatprep.subr.mxu0 0.0
    %124 = vmatpush2.xpose.msra.mxu0 0.0
    %125 = vmatprep.subr.mxu0 0.0
    %126 = vmatpush2.xpose.msra.mxu0 0.0
    %127 = vmatprep.subr.mxu0 0.0
    %128 = vmatpush2.xpose.msra.mxu0 0.0
    %129 = vmatprep.subr.mxu0 0.0
    %130 = vmatpush2.xpose.msra.mxu0 0.0
    %131 = vmatprep.subr.mxu0 0.0
    %132 = vmatpush2.xpose.msra.mxu0 0.0
    %133 = vmatprep.subr.mxu0 0.0
    %134 = vmatpush2.xpose.msra.mxu0 0.0
    %135 = vmatprep.subr.mxu0 0.0
    %136 = vmatpush2.xpose.msra.mxu0 0.0
    %137 = vmatprep.subr.mxu0 0.0
    %138 = vmatpush2.xpose.msra.mxu0 0.0
    %139 = vmatprep.subr.mxu0 0.0
    %140 = vmatpush2.xpose.msra.mxu0 0.0
    %141 = vmatprep.subr.mxu0 0.0
    %142 = vmatpush2.xpose.msra.mxu0 0.0
    %143 = vmatprep.subr.mxu0 0.0
    %144 = vmatpush2.xpose.msra.mxu0 0.0
    %145 = vmatprep.subr.mxu0 0.0
    %146 = vmatpush2.xpose.msra.mxu0 0.0
    %147 = vmatprep.subr.mxu0 0.0
    %148 = vmatpush2.xpose.msra.mxu0 0.0
    %149 = vmatprep.subr.mxu0 0.0
    %150 = vmatpush2.xpose.msra.mxu0 0.0
    %151 = vmatprep.subr.mxu0 0.0
    %152 = vmatpush2.xpose.msra.mxu0 0.0
    %153 = vmatprep.subr.mxu0 0.0
    %154 = vmatpush2.xpose.msra.mxu0 0.0
    %155 = vmatprep.mubr.f32.mxu0 0.0
    %156 = vmatmul.mubr.f32.gmra.mxu0 %v44
    %v157 = vpop.f32.mrf.mxu0
    %v158 = vadd.f32 %v40, %v157
    %v159 = vpop.f32.mrf.mxu0
    %160 = vmatprep.mubr.f32.mxu0 0.0
    %161 = vmatmul.mubr.f32.gmra.mxu0 %v47
    %v162 = vpop.f32.mrf.mxu0
    %v163 = vadd.f32 %v40, %v162
    %v164 = vpop.f32.mrf.mxu0
    %165 = vmatprep.mubr.f32.mxu0 0.0
    %166 = vmatmul.mubr.f32.gmra.mxu0 %v50
    %v167 = vpop.f32.mrf.mxu0
    %v168 = vadd.f32 %v40, %v167
    %v169 = vpop.f32.mrf.mxu0
    %170 = vmatprep.mubr.f32.mxu0 0.0
    %171 = vmatmul.mubr.f32.gmra.mxu0 %v53
    %v172 = vpop.f32.mrf.mxu0
    %v173 = vadd.f32 %v40, %v172
    %v174 = vpop.f32.mrf.mxu0
    %175 = vdwg.mxu0
    %176 = vst.msk [vmem:[#allocation2] sm:$0xff] %vm42, %v158
    %177 = vst.msk [vmem:[#allocation2 + $0x8] sm:$0xff] %vm42, %v163
    %178 = vst.msk [vmem:[#allocation2 + $0x10] sm:$0xff] %vm42, %v168
    %179 = vst.msk [vmem:[#allocation2 + $0x18] sm:$0xff] %vm42, %v173
    %184 = vrot.lane.b32.xlu0 %v158, 96
    %v185 = vpop.permute.xlu0 %184
    %186 = vrot.lane.b32.xlu0 %v163, 96
    %v187 = vpop.permute.xlu0 %186
    %188 = vrot.lane.b32.xlu0 %v168, 96
    %v189 = vpop.permute.xlu0 %188
    %190 = vrot.lane.b32.xlu0 %v173, 96
    %v191 = vpop.permute.xlu0 %190
    %196 = vst.msk [vmem:[#allocation4] sm:$0xff] %vm42, %v185
    %197 = vst.msk [vmem:[#allocation4 + $0x8] sm:$0xff] %vm42, %v187
    %198 = vst.msk [vmem:[#allocation4 + $0x10] sm:$0xff] %vm42, %v189
    %199 = vst.msk [vmem:[#allocation4 + $0x18] sm:$0xff] %vm42, %v191
    %200 = vrot.lane.b32.xlu0 %v158, 64
    %v201 = vpop.permute.xlu0 %200
    %202 = vrot.lane.b32.xlu0 %v163, 64
    %v203 = vpop.permute.xlu0 %202
    %204 = vrot.lane.b32.xlu0 %v168, 64
    %v205 = vpop.permute.xlu0 %204
    %206 = vrot.lane.b32.xlu0 %v173, 64
    %v207 = vpop.permute.xlu0 %206
    %212 = vst.msk [vmem:[#allocation6] sm:$0xff] %vm42, %v201
    %213 = vst.msk [vmem:[#allocation6 + $0x8] sm:$0xff] %vm42, %v203
    %214 = vst.msk [vmem:[#allocation6 + $0x10] sm:$0xff] %vm42, %v205
    %215 = vst.msk [vmem:[#allocation6 + $0x18] sm:$0xff] %vm42, %v207
    // Predicated region
    $region14: #{tpu_custom_call.1} parent=1 // pred_check
      _
    $region15: #{tpu_custom_call.1} parent=1 // pred_check_branch
      %217 = sbr.rel (0) target = $region17
    $region16: #{tpu_custom_call.1} parent=1 // pred_region
      %s219 = ssub.s32 512, 512
      %220 = vsyncadd [#allocation3], %s219
      %s221 = sshll.u32 [#allocation2], 4
      %s222 = int_to_ptr.vmem [resolvable:$true] %s221
      %227 = dma.vmem_to_hbm [thread:$0]  %s222, 512, %s3, [#allocation3], 128, 128, 8
    $region17: #{tpu_custom_call.1} parent=1 // pred_fallthru
      _
    // Predicated region
    $region18: #{tpu_custom_call.1} parent=1 // pred_check
      _
    $region19: #{tpu_custom_call.1} parent=1 // pred_check_branch
      %229 = sbr.rel (0) target = $region21
    $region20: #{tpu_custom_call.1} parent=1 // pred_region
      %s231 = ssub.s32 512, 512
      %232 = vsyncadd [#allocation5], %s231
      %s233 = sshll.u32 [#allocation4], 4
      %s234 = int_to_ptr.vmem [resolvable:$true] %s233
      %239 = dma.vmem_to_hbm [thread:$0]  %s234, 512, %s4, [#allocation5], 128, 128, 8
    $region21: #{tpu_custom_call.1} parent=1 // pred_fallthru
      _
    // Predicated region
    $region22: #{tpu_custom_call.1} parent=1 // pred_check
      _
    $region23: #{tpu_custom_call.1} parent=1 // pred_check_branch
      %241 = sbr.rel (0) target = $region25
    $region24: #{tpu_custom_call.1} parent=1 // pred_region
      %s243 = ssub.s32 512, 512
      %244 = vsyncadd [#allocation5], %s243
      %s245 = sshll.u32 [#allocation6], 4
      %s246 = int_to_ptr.vmem [resolvable:$true] %s245
      %251 = dma.vmem_to_hbm [thread:$0]  %s246, 512, %s5, [#allocation5], 128, 128, 8
    $region25: #{tpu_custom_call.1} parent=1 // pred_fallthru
      _
    // Predicated region
    $region26: #{tpu_custom_call.1} parent=1 // pred_check
      _
    $region27: #{tpu_custom_call.1} parent=1 // pred_check_branch
      %253 = sbr.rel (0) target = $region29
    $region28: #{tpu_custom_call.1} parent=1 // pred_region
      %254 = dma.done [#allocation3], 512
    $region29: #{tpu_custom_call.1} parent=1 // pred_fallthru
      _
    // Predicated region
    $region30: #{tpu_custom_call.1} parent=1 // pred_check
      _
    $region31: #{tpu_custom_call.1} parent=1 // pred_check_branch
      %256 = sbr.rel (0) target = $region33
    $region32: #{tpu_custom_call.1} parent=1 // pred_region
      %257 = dma.done [#allocation5], 512
    $region33: #{tpu_custom_call.1} parent=1 // pred_fallthru
      _
    // Predicated region
    $region34: #{tpu_custom_call.1} parent=1 // pred_check
      _
    $region35: #{tpu_custom_call.1} parent=1 // pred_check_branch
      %259 = sbr.rel (0) target = $region37
    $region36: #{tpu_custom_call.1} parent=1 // pred_region
      %260 = dma.done [#allocation5], 512
    $region37: #{tpu_custom_call.1} parent=1 // pred_fallthru
      _
    %261 = vsyncpa [#allocation3], 1
    %262 = vsyncpa [#allocation5], 1

</llo_original>
